<compile_context>
chip_gen: v7x
topology: tpu7x:2x2x1
jax: 0.10.0
libtpu: 0.0.40
codegen_flags: <defaults>
</compile_context>

<pallas_src>
import functools

import jax
import jax.numpy as jnp
from jax import lax
from jax.experimental import pallas as pl
from jax.experimental.pallas import tpu as pltpu


def conv_bn_kernel(w_ref, x_ref, gb_ref, o_ref, *, n_valid, eps):
    # 1x1 conv as y^T = W @ X: (cb, Cin) @ (Cin, P) -> (cb, P).  MXU hot path.
    y = jnp.dot(w_ref[...], x_ref[...], preferred_element_type=jnp.float32)

    # Physical VMEM lanes >= n_valid (tile padding) may hold garbage; mask with a
    # SELECT (not a multiply) so NaN/Inf bit patterns cannot propagate into sums.
    mask = lax.broadcasted_iota(jnp.int32, y.shape, 1) < n_valid
    n = jnp.float32(n_valid)

    y0 = jnp.where(mask, y, 0.0)
    mean = jnp.sum(y0, axis=1, keepdims=True) / n                  # (cb, 1)

    # Centered (two-pass) variance: cheap VPU filler, much better cancellation
    # behavior than E[y^2] - E[y]^2 for real checkpoints.  Biased (ddof=0), as in
    # PyTorch training-mode BatchNorm.
    yc = jnp.where(mask, y - mean, 0.0)
    var = jnp.sum(yc * yc, axis=1, keepdims=True) / n              # (cb, 1)
    inv = lax.rsqrt(var + eps)                                     # EUP

    # Fold normalize + affine into a single per-element multiply-add.
    gamma = gb_ref[:, 0:1]                                         # (cb, 1)
    beta = gb_ref[:, 1:2]                                          # (cb, 1)
    scale = inv * gamma
    shift = beta - mean * scale
    o_ref[...] = y * scale + shift


def _tensorcores_per_chip():
    """2 on v7x (dual TensorCore), 1 on v5e/v6e.  Heuristic; defaults to 1."""
    try:
        d = jax.devices()[0]
        if d.platform != "tpu":
            return 1
        kind = (getattr(d, "device_kind", "") or "").lower()
        if "v7" in kind:
            return 2
        return 1
    except Exception:  # pragma: no cover - defensive
        return 1


def conv2d_1x1_batchnorm(x_nchw, w_oihw, gamma, beta, eps=1e-5):
    """x_nchw: (N, Cin, H, W) f32; w_oihw: (Cout, Cin, 1, 1); gamma/beta: (Cout,)"""
    N, Cin, H, W = x_nchw.shape
    Cout = w_oihw.shape[0]
    P = N * H * W

    # NCHW -> (Cin, P).  For N == 1 this is a pure reshape (no data movement).
    x_cp = jnp.moveaxis(x_nchw, 1, 0).reshape(Cin, P).astype(jnp.float32)
    # (Cout, Cin, 1, 1) -> (Cout, Cin): no transpose needed in this layout.
    w_oc = w_oihw.reshape(Cout, Cin).astype(jnp.float32)
    # Merge gamma/beta into one (Cout, 2) input (halves the tiny-DMA count).
    # TODO(synk): in a real model pre-pack this once outside the hot path.
    gb = jnp.stack([gamma, beta], axis=1).astype(jnp.float32)

    # v7x: split Cout across both TensorCores; v5e/v6e: single block (grid=(1,)).
    num_blocks = 2 if (_tensorcores_per_chip() >= 2
                       and Cout % 2 == 0 and (Cout // 2) % 8 == 0) else 1
    cb = Cout // num_blocks

    # Whole arrays fit VMEM easily at this size (x ~301 KB, w ~196 KB, out ~100 KB).
    # TODO(synk): for much larger P (bigger N/H/W) switch to a gridded two-pass BN
    # (stats pass + normalize pass, Cout/P parallel); the crossover is ~half as
    # large on v7x (64 MiB physical VMEM) as on v5e/v6e (128 MiB).
    kernel = functools.partial(conv_bn_kernel, n_valid=P, eps=eps)
    flops = 2 * P * Cin * Cout + 6 * Cout * P
    bytes_accessed = 4 * (num_blocks * Cin * P + Cout * Cin + Cout * P + 2 * Cout)

    out = pl.pallas_call(
        kernel,
        out_shape=jax.ShapeDtypeStruct((Cout, P), jnp.float32),
        grid=(num_blocks,),
        in_specs=[
            pl.BlockSpec((cb, Cin), lambda i: (i, 0)),   # w          (Cout, Cin)
            pl.BlockSpec((Cin, P), lambda i: (0, 0)),    # x          (Cin, P), replicated
            pl.BlockSpec((cb, 2), lambda i: (i, 0)),     # gamma/beta (Cout, 2)
        ],
        out_specs=pl.BlockSpec((cb, P), lambda i: (i, 0)),
        compiler_params=pltpu.CompilerParams(
            dimension_semantics=("parallel",),
            vmem_limit_bytes=8 * 1024 * 1024),
        cost_estimate=pl.CostEstimate(
            flops=flops, transcendentals=Cout, bytes_accessed=bytes_accessed),
    )(w_oc, x_cp, gb)

    # (Cout, P) -> (N, Cout, H, W).  For N == 1 the transpose only moves a size-1
    # axis (free reshape).
    out = out.reshape(Cout, N, H, W)
    return jnp.transpose(out, (1, 0, 2, 3))


if __name__ == "__main__":
    key = jax.random.PRNGKey(0)
    k_x, k_w = jax.random.split(key)

    # Shapes implied by the module: Conv2d(384 -> 128, 1x1), input [1, 384, 14, 14].
    N, Cin, H, W, Cout = 1, 384, 14, 14, 128
    eps = 1e-5
    x = jax.random.normal(k_x, (N, Cin, H, W), dtype=jnp.float32)

    # Deterministic parameter init (synthetic; matches shapes of the PyTorch module).
    fan_in = Cin  # 1x1 kernel
    bound = 1.0 / (fan_in ** 0.5)
    w = jax.random.uniform(k_w, (Cout, Cin, 1, 1), minval=-bound, maxval=bound,
                           dtype=jnp.float32)
    gamma = jnp.ones((Cout,), jnp.float32)   # BatchNorm2d weight init
    beta = jnp.zeros((Cout,), jnp.float32)   # BatchNorm2d bias init
    # TODO(synk): running_mean/running_var momentum update (training side effect)
    # is not part of the returned tensor and is omitted.

    y = conv2d_1x1_batchnorm(x, w, gamma, beta, eps=eps)
    jax.block_until_ready(y)
    assert y.shape == (N, Cout, H, W) and y.dtype == jnp.float32

    # Pure-JAX reference check (training-mode BN with biased batch variance).
    y_conv = jnp.einsum("oc,nchw->nohw", w.reshape(Cout, Cin), x)
    mu = y_conv.mean(axis=(0, 2, 3), keepdims=True)
    var = y_conv.var(axis=(0, 2, 3), keepdims=True)  # biased (ddof=0), as in PyTorch BN
    y_ref = ((y_conv - mu) * lax.rsqrt(var + eps)
             * gamma.reshape(1, Cout, 1, 1) + beta.reshape(1, Cout, 1, 1))
    assert jnp.allclose(y, y_ref, atol=2e-3, rtol=2e-3)

    print("KERNEL_OK")
</pallas_src>

<mosaic_0001>
module attributes {stable_mosaic.version = 11 : i64} {
  func.func @conv_bn_kernel(%arg0: i32, %arg1: memref<128x384xf32, #tpu.memory_space<vmem>>, %arg2: memref<384x196xf32, #tpu.memory_space<vmem>>, %arg3: memref<128x2xf32, #tpu.memory_space<vmem>>, %arg4: memref<128x196xf32, #tpu.memory_space<vmem>>) attributes {dimension_semantics = [#tpu.dimension_semantics<parallel>], iteration_bounds = array<i64: 1>, scalar_prefetch = 0 : i64, scratch_operands = 0 : i64, tpu.core_type = #tpu.core_type<tc>, window_params = [{transform_indices = @transform_0, window_bounds = array<i64: 128, 384>}, {pipeline_mode = #tpu.pipeline_mode<synchronous>, transform_indices = @transform_1, window_bounds = array<i64: 384, 196>}, {transform_indices = @transform_2, window_bounds = array<i64: 128, 2>}, {transform_indices = @transform_3, window_bounds = array<i64: 128, 196>}]} {
    %c0 = arith.constant 0 : index
    %c0_0 = arith.constant 0 : index
    %0 = vector.load %arg1[%c0, %c0_0] : memref<128x384xf32, #tpu.memory_space<vmem>>, vector<128x384xf32>
    %c0_1 = arith.constant 0 : index
    %c0_2 = arith.constant 0 : index
    %1 = vector.load %arg2[%c0_1, %c0_2] : memref<384x196xf32, #tpu.memory_space<vmem>>, vector<384x196xf32>
    %cst = arith.constant dense<0.000000e+00> : vector<128x196xf32>
    %2 = tpu.matmul %0, %1, %cst {dimension_numbers = #tpu.dot_dimension_numbers<[1], [0], [0], [1], [0, 0, 1, 1], [], []>} : vector<128x384xf32>, vector<384x196xf32>, vector<128x196xf32> -> vector<128x196xf32>
    %3 = tpu.iota {dimensions = array<i32: 1>} : vector<128x196xi32>
    %c196_i32 = arith.constant 196 : i32
    %4 = vector.broadcast %c196_i32 : i32 to vector<128x196xi32>
    %5 = arith.cmpi slt, %3, %4 : vector<128x196xi32>
    %cst_3 = arith.constant 0.000000e+00 : f32
    %6 = vector.broadcast %cst_3 : f32 to vector<128x196xf32>
    %7 = arith.select %5, %2, %6 : vector<128x196xi1>, vector<128x196xf32>
    %cst_4 = arith.constant dense<0.000000e+00> : vector<128xf32>
    %8 = vector.multi_reduction <add>, %7, %cst_4 [1] : vector<128x196xf32> to vector<128xf32>
    %9 = vector.shape_cast %8 : vector<128xf32> to vector<128x1xf32>
    %cst_5 = arith.constant 1.960000e+02 : f32
    %10 = vector.broadcast %cst_5 : f32 to vector<128x1xf32>
    %11 = arith.divf %9, %10 : vector<128x1xf32>
    %12 = vector.broadcast %11 : vector<128x1xf32> to vector<128x196xf32>
    %13 = arith.subf %2, %12 : vector<128x196xf32>
    %cst_6 = arith.constant 0.000000e+00 : f32
    %14 = vector.broadcast %cst_6 : f32 to vector<128x196xf32>
    %15 = arith.select %5, %13, %14 : vector<128x196xi1>, vector<128x196xf32>
    %16 = arith.mulf %15, %15 : vector<128x196xf32>
    %cst_7 = arith.constant dense<0.000000e+00> : vector<128xf32>
    %17 = vector.multi_reduction <add>, %16, %cst_7 [1] : vector<128x196xf32> to vector<128xf32>
    %18 = vector.shape_cast %17 : vector<128xf32> to vector<128x1xf32>
    %cst_8 = arith.constant 1.960000e+02 : f32
    %19 = vector.broadcast %cst_8 : f32 to vector<128x1xf32>
    %20 = arith.divf %18, %19 : vector<128x1xf32>
    %cst_9 = arith.constant 9.99999974E-6 : f32
    %21 = vector.broadcast %cst_9 : f32 to vector<128x1xf32>
    %22 = arith.addf %20, %21 : vector<128x1xf32>
    %23 = math.rsqrt %22 : vector<128x1xf32>
    %c0_10 = arith.constant 0 : index
    %c0_11 = arith.constant 0 : index
    %24 = vector.load %arg3[%c0_10, %c0_11] : memref<128x2xf32, #tpu.memory_space<vmem>>, vector<128x1xf32>
    %c0_12 = arith.constant 0 : index
    %c1 = arith.constant 1 : index
    %25 = vector.load %arg3[%c0_12, %c1] : memref<128x2xf32, #tpu.memory_space<vmem>>, vector<128x1xf32>
    %26 = arith.mulf %23, %24 : vector<128x1xf32>
    %27 = arith.mulf %11, %26 : vector<128x1xf32>
    %28 = arith.subf %25, %27 : vector<128x1xf32>
    %29 = vector.broadcast %26 : vector<128x1xf32> to vector<128x196xf32>
    %30 = arith.mulf %2, %29 : vector<128x196xf32>
    %31 = vector.broadcast %28 : vector<128x1xf32> to vector<128x196xf32>
    %32 = arith.addf %30, %31 : vector<128x196xf32>
    %c0_13 = arith.constant 0 : index
    %c0_14 = arith.constant 0 : index
    %33 = vector.load %arg4[%c0_13, %c0_14] : memref<128x196xf32, #tpu.memory_space<vmem>>, vector<128x196xf32>
    tpu.vector_store %arg4[%c0_13, %c0_14], %32 {strides = array<i32>} : memref<128x196xf32, #tpu.memory_space<vmem>>, vector<128x196xf32>,
    return
  }
  func.func @transform_0(%arg0: i32) -> (i32, i32) {
    %c0_i32 = arith.constant 0 : i32
    %c0_i32_0 = arith.constant 0 : i32
    return %arg0, %c0_i32 : i32, i32
  }
  func.func @transform_1(%arg0: i32) -> (i32, i32) {
    %c0_i32 = arith.constant 0 : i32
    %c0_i32_0 = arith.constant 0 : i32
    %c0_i32_1 = arith.constant 0 : i32
    return %c0_i32, %c0_i32_0 : i32, i32
  }
  func.func @transform_2(%arg0: i32) -> (i32, i32) {
    %c0_i32 = arith.constant 0 : i32
    %c0_i32_0 = arith.constant 0 : i32
    return %arg0, %c0_i32 : i32, i32
  }
  func.func @transform_3(%arg0: i32) -> (i32, i32) {
    %c0_i32 = arith.constant 0 : i32
    %c0_i32_0 = arith.constant 0 : i32
    return %arg0, %c0_i32 : i32, i32
  }
}

</mosaic_0001>

<llo_original>
// kernel: tpu_custom_call.1
$region0: #{tpu_custom_call.1}
  #allocation0 [shape = 'u32[]', space=smem, size = 0x4, offset = 0x4, fixed_abs, tag = 'smem constant byte address 0x4 - core index']
  #allocation1 [shape = 'u32[144,128]{1,0:T(1,128)}', space=vmem, size = 0x12000, scoped, tag = 'internal scratch']
  %s0 = inlined_call_operand.vmem [shape: f32[128,384], index: 0, kind: input, shape index: {}]
  %s1 = inlined_call_operand.vmem [shape: f32[384,196], index: 1, kind: input, shape index: {}]
  %s2 = inlined_call_operand.vmem [shape: f32[128,2], index: 2, kind: input, shape index: {}]
  %s3 = inlined_call_operand.vmem [shape: f32[128,196], index: 3, kind: output, shape index: {}]
  %s4 = sld [smem:[#allocation0]]
  $region22: #{tpu_custom_call.1} parent=0
    _
  %s6 = ssub.s32 1, %s4
  %s7 = scalar_select 0, %s6, %s4
  // Predicated region
  $region2: #{tpu_custom_call.1} parent=0 // pred_check
    _
  $region3: #{tpu_custom_call.1} parent=0 // pred_check_branch
    %9 = sbr.rel (0) target = $region5
  $region4: #{tpu_custom_call.1} parent=0 // pred_region
    _
  $region5: #{tpu_custom_call.1} parent=0 // pred_fallthru
    _
  // Predicated region
  $region6: #{tpu_custom_call.1} parent=0 // pred_check
    _
  $region7: #{tpu_custom_call.1} parent=0 // pred_check_branch
    %11 = sbr.rel (0) target = $region9
  $region8: #{tpu_custom_call.1} parent=0 // pred_region
    _
  $region9: #{tpu_custom_call.1} parent=0 // pred_fallthru
    _
  // Predicated region
  $region10: #{tpu_custom_call.1} parent=0 // pred_check
    _
  $region11: #{tpu_custom_call.1} parent=0 // pred_check_branch
    %13 = sbr.rel (0) target = $region13
  $region12: #{tpu_custom_call.1} parent=0 // pred_region
    _
  $region13: #{tpu_custom_call.1} parent=0 // pred_fallthru
    _
  %v14 = vld [vmem:[%s0] sm:$0xff]
  %v15 = vld [vmem:[%s0 + $0x8] sm:$0xff]
  %v16 = vld [vmem:[%s0 + $0x10] sm:$0xff]
  %v17 = vld [vmem:[%s0 + $0x18] sm:$0xff]
  %v18 = vld [vmem:[%s0 + $0x20] sm:$0xff]
  %v19 = vld [vmem:[%s0 + $0x28] sm:$0xff]
  %v20 = vld [vmem:[%s0 + $0x30] sm:$0xff]
  %v21 = vld [vmem:[%s0 + $0x38] sm:$0xff]
  %v22 = vld [vmem:[%s0 + $0x40] sm:$0xff]
  %v23 = vld [vmem:[%s0 + $0x48] sm:$0xff]
  %v24 = vld [vmem:[%s0 + $0x50] sm:$0xff]
  %v25 = vld [vmem:[%s0 + $0x58] sm:$0xff]
  %v26 = vld [vmem:[%s0 + $0x60] sm:$0xff]
  %v27 = vld [vmem:[%s0 + $0x68] sm:$0xff]
  %v28 = vld [vmem:[%s0 + $0x70] sm:$0xff]
  %v29 = vld [vmem:[%s0 + $0x78] sm:$0xff]
  %v30 = vld [vmem:[%s0 + $0x80] sm:$0xff]
  %v31 = vld [vmem:[%s0 + $0x88] sm:$0xff]
  %v32 = vld [vmem:[%s0 + $0x90] sm:$0xff]
  %v33 = vld [vmem:[%s0 + $0x98] sm:$0xff]
  %v34 = vld [vmem:[%s0 + $0xa0] sm:$0xff]
  %v35 = vld [vmem:[%s0 + $0xa8] sm:$0xff]
  %v36 = vld [vmem:[%s0 + $0xb0] sm:$0xff]
  %v37 = vld [vmem:[%s0 + $0xb8] sm:$0xff]
  %v38 = vld [vmem:[%s0 + $0xc0] sm:$0xff]
  %v39 = vld [vmem:[%s0 + $0xc8] sm:$0xff]
  %v40 = vld [vmem:[%s0 + $0xd0] sm:$0xff]
  %v41 = vld [vmem:[%s0 + $0xd8] sm:$0xff]
  %v42 = vld [vmem:[%s0 + $0xe0] sm:$0xff]
  %v43 = vld [vmem:[%s0 + $0xe8] sm:$0xff]
  %v44 = vld [vmem:[%s0 + $0xf0] sm:$0xff]
  %v45 = vld [vmem:[%s0 + $0xf8] sm:$0xff]
  %v46 = vld [vmem:[%s0 + $0x100] sm:$0xff]
  %v47 = vld [vmem:[%s0 + $0x108] sm:$0xff]
  %v48 = vld [vmem:[%s0 + $0x110] sm:$0xff]
  %v49 = vld [vmem:[%s0 + $0x118] sm:$0xff]
  %v50 = vld [vmem:[%s0 + $0x120] sm:$0xff]
  %v51 = vld [vmem:[%s0 + $0x128] sm:$0xff]
  %v52 = vld [vmem:[%s0 + $0x130] sm:$0xff]
  %v53 = vld [vmem:[%s0 + $0x138] sm:$0xff]
  %v54 = vld [vmem:[%s0 + $0x140] sm:$0xff]
  %v55 = vld [vmem:[%s0 + $0x148] sm:$0xff]
  %v56 = vld [vmem:[%s0 + $0x150] sm:$0xff]
  %v57 = vld [vmem:[%s0 + $0x158] sm:$0xff]
  %v58 = vld [vmem:[%s0 + $0x160] sm:$0xff]
  %v59 = vld [vmem:[%s0 + $0x168] sm:$0xff]
  %v60 = vld [vmem:[%s0 + $0x170] sm:$0xff]
  %v61 = vld [vmem:[%s0 + $0x178] sm:$0xff]
  %v62 = vld [vmem:[%s1] sm:$0xff]
  %v63 = vld [vmem:[%s1 + $0x8] sm:$0xff]
  %v64 = vld [vmem:[%s1 + $0x10] sm:$0xff]
  %v65 = vld [vmem:[%s1 + $0x18] sm:$0xff]
  %v66 = vld [vmem:[%s1 + $0x20] sm:$0xff]
  %v67 = vld [vmem:[%s1 + $0x28] sm:$0xff]
  %v68 = vld [vmem:[%s1 + $0x30] sm:$0xff]
  %v69 = vld [vmem:[%s1 + $0x38] sm:$0xff]
  %v70 = vld [vmem:[%s1 + $0x40] sm:$0xff]
  %v71 = vld [vmem:[%s1 + $0x48] sm:$0xff]
  %v72 = vld [vmem:[%s1 + $0x50] sm:$0xff]
  %v73 = vld [vmem:[%s1 + $0x58] sm:$0xff]
  %v74 = vld [vmem:[%s1 + $0x60] sm:$0xff]
  %v75 = vld [vmem:[%s1 + $0x68] sm:$0xff]
  %v76 = vld [vmem:[%s1 + $0x70] sm:$0xff]
  %v77 = vld [vmem:[%s1 + $0x78] sm:$0xff]
  %v78 = vld [vmem:[%s1 + $0x80] sm:$0xff]
  %v79 = vld [vmem:[%s1 + $0x88] sm:$0xff]
  %v80 = vld [vmem:[%s1 + $0x90] sm:$0xff]
  %v81 = vld [vmem:[%s1 + $0x98] sm:$0xff]
  %v82 = vld [vmem:[%s1 + $0xa0] sm:$0xff]
  %v83 = vld [vmem:[%s1 + $0xa8] sm:$0xff]
  %v84 = vld [vmem:[%s1 + $0xb0] sm:$0xff]
  %v85 = vld [vmem:[%s1 + $0xb8] sm:$0xff]
  %v86 = vld [vmem:[%s1 + $0xc0] sm:$0xff]
  %v87 = vld [vmem:[%s1 + $0xc8] sm:$0xff]
  %v88 = vld [vmem:[%s1 + $0xd0] sm:$0xff]
  %v89 = vld [vmem:[%s1 + $0xd8] sm:$0xff]
  %v90 = vld [vmem:[%s1 + $0xe0] sm:$0xff]
  %v91 = vld [vmem:[%s1 + $0xe8] sm:$0xff]
  %v92 = vld [vmem:[%s1 + $0xf0] sm:$0xff]
  %v93 = vld [vmem:[%s1 + $0xf8] sm:$0xff]
  %v94 = vld [vmem:[%s1 + $0x100] sm:$0xff]
  %v95 = vld [vmem:[%s1 + $0x108] sm:$0xff]
  %v96 = vld [vmem:[%s1 + $0x110] sm:$0xff]
  %v97 = vld [vmem:[%s1 + $0x118] sm:$0xff]
  %v98 = vld [vmem:[%s1 + $0x120] sm:$0xff]
  %v99 = vld [vmem:[%s1 + $0x128] sm:$0xff]
  %v100 = vld [vmem:[%s1 + $0x130] sm:$0xff]
  %v101 = vld [vmem:[%s1 + $0x138] sm:$0xff]
  %v102 = vld [vmem:[%s1 + $0x140] sm:$0xff]
  %v103 = vld [vmem:[%s1 + $0x148] sm:$0xff]
  %v104 = vld [vmem:[%s1 + $0x150] sm:$0xff]
  %v105 = vld [vmem:[%s1 + $0x158] sm:$0xff]
  %v106 = vld [vmem:[%s1 + $0x160] sm:$0xff]
  %v107 = vld [vmem:[%s1 + $0x168] sm:$0xff]
  %v108 = vld [vmem:[%s1 + $0x170] sm:$0xff]
  %v109 = vld [vmem:[%s1 + $0x178] sm:$0xff]
  %v110 = vld [vmem:[%s1 + $0x180] sm:$0xff]
  %v111 = vld [vmem:[%s1 + $0x188] sm:$0xff]
  %v112 = vld [vmem:[%s1 + $0x190] sm:$0xff]
  %v113 = vld [vmem:[%s1 + $0x198] sm:$0xff]
  %v114 = vld [vmem:[%s1 + $0x1a0] sm:$0xff]
  %v115 = vld [vmem:[%s1 + $0x1a8] sm:$0xff]
  %v116 = vld [vmem:[%s1 + $0x1b0] sm:$0xff]
  %v117 = vld [vmem:[%s1 + $0x1b8] sm:$0xff]
  %v118 = vld [vmem:[%s1 + $0x1c0] sm:$0xff]
  %v119 = vld [vmem:[%s1 + $0x1c8] sm:$0xff]
  %v120 = vld [vmem:[%s1 + $0x1d0] sm:$0xff]
  %v121 = vld [vmem:[%s1 + $0x1d8] sm:$0xff]
  %v122 = vld [vmem:[%s1 + $0x1e0] sm:$0xff]
  %v123 = vld [vmem:[%s1 + $0x1e8] sm:$0xff]
  %v124 = vld [vmem:[%s1 + $0x1f0] sm:$0xff]
  %v125 = vld [vmem:[%s1 + $0x1f8] sm:$0xff]
  %v126 = vld [vmem:[%s1 + $0x200] sm:$0xff]
  %v127 = vld [vmem:[%s1 + $0x208] sm:$0xff]
  %v128 = vld [vmem:[%s1 + $0x210] sm:$0xff]
  %v129 = vld [vmem:[%s1 + $0x218] sm:$0xff]
  %v130 = vld [vmem:[%s1 + $0x220] sm:$0xff]
  %v131 = vld [vmem:[%s1 + $0x228] sm:$0xff]
  %v132 = vld [vmem:[%s1 + $0x230] sm:$0xff]
  %v133 = vld [vmem:[%s1 + $0x238] sm:$0xff]
  %v134 = vld [vmem:[%s1 + $0x240] sm:$0xff]
  %v135 = vld [vmem:[%s1 + $0x248] sm:$0xff]
  %v136 = vld [vmem:[%s1 + $0x250] sm:$0xff]
  %v137 = vld [vmem:[%s1 + $0x258] sm:$0xff]
  %v138 = vld [vmem:[%s1 + $0x260] sm:$0xff]
  %v139 = vld [vmem:[%s1 + $0x268] sm:$0xff]
  %v140 = vld [vmem:[%s1 + $0x270] sm:$0xff]
  %v141 = vld [vmem:[%s1 + $0x278] sm:$0xff]
  %v142 = vld [vmem:[%s1 + $0x280] sm:$0xff]
  %v143 = vld [vmem:[%s1 + $0x288] sm:$0xff]
  %v144 = vld [vmem:[%s1 + $0x290] sm:$0xff]
  %v145 = vld [vmem:[%s1 + $0x298] sm:$0xff]
  %v146 = vld [vmem:[%s1 + $0x2a0] sm:$0xff]
  %v147 = vld [vmem:[%s1 + $0x2a8] sm:$0xff]
  %v148 = vld [vmem:[%s1 + $0x2b0] sm:$0xff]
  %v149 = vld [vmem:[%s1 + $0x2b8] sm:$0xff]
  %v150 = vld [vmem:[%s1 + $0x2c0] sm:$0xff]
  %v151 = vld [vmem:[%s1 + $0x2c8] sm:$0xff]
  %v152 = vld [vmem:[%s1 + $0x2d0] sm:$0xff]
  %v153 = vld [vmem:[%s1 + $0x2d8] sm:$0xff]
  %v154 = vld [vmem:[%s1 + $0x2e0] sm:$0xff]
  %v155 = vld [vmem:[%s1 + $0x2e8] sm:$0xff]
  %v156 = vld [vmem:[%s1 + $0x2f0] sm:$0xff]
  %v157 = vld [vmem:[%s1 + $0x2f8] sm:$0xff]
  %158 = vmatprep.subr.mxu0 %v63
  %159 = vmatpush1.msra.mxu0 %v62
  %160 = vmatprep.subr.mxu0 %v65
  %161 = vmatpush1.msra.mxu0 %v64
  %162 = vmatprep.subr.mxu0 %v67
  %163 = vmatpush1.msra.mxu0 %v66
  %164 = vmatprep.subr.mxu0 %v69
  %165 = vmatpush1.msra.mxu0 %v68
  %166 = vmatprep.subr.mxu0 %v71
  %167 = vmatpush1.msra.mxu0 %v70
  %168 = vmatprep.subr.mxu0 %v73
  %169 = vmatpush1.msra.mxu0 %v72
  %170 = vmatprep.subr.mxu0 %v75
  %171 = vmatpush1.msra.mxu0 %v74
  %172 = vmatprep.subr.mxu0 %v77
  %173 = vmatpush1.msra.mxu0 %v76
  %174 = vmatprep.subr.mxu0 %v79
  %175 = vmatpush1.msra.mxu0 %v78
  %176 = vmatprep.subr.mxu0 %v81
  %177 = vmatpush1.msra.mxu0 %v80
  %178 = vmatprep.subr.mxu0 %v83
  %179 = vmatpush1.msra.mxu0 %v82
  %180 = vmatprep.subr.mxu0 %v85
  %181 = vmatpush1.msra.mxu0 %v84
  %182 = vmatprep.subr.mxu0 %v87
  %183 = vmatpush1.msra.mxu0 %v86
  %184 = vmatprep.subr.mxu0 %v89
  %185 = vmatpush1.msra.mxu0 %v88
  %186 = vmatprep.subr.mxu0 %v91
  %187 = vmatpush1.msra.mxu0 %v90
  %188 = vmatprep.subr.mxu0 %v93
  %189 = vmatpush1.msra.mxu0 %v92
  %190 = vmatprep.subr.mxu0 %v95
  %191 = vmatpush1.msra.mxu0 %v94
  %192 = vmatprep.subr.mxu0 %v97
  %193 = vmatpush1.msra.mxu0 %v96
  %194 = vmatprep.subr.mxu0 %v99
  %195 = vmatpush1.msra.mxu0 %v98
  %196 = vmatprep.subr.mxu0 %v101
  %197 = vmatpush1.msra.mxu0 %v100
  %198 = vmatprep.subr.mxu0 %v103
  %199 = vmatpush1.msra.mxu0 %v102
  %200 = vmatprep.subr.mxu0 %v105
  %201 = vmatpush1.msra.mxu0 %v104
  %202 = vmatprep.subr.mxu0 %v107
  %203 = vmatpush1.msra.mxu0 %v106
  %204 = vmatprep.subr.mxu0 %v109
  %205 = vmatpush1.msra.mxu0 %v108
  %206 = vmatprep.subr.mxu0 %v111
  %207 = vmatpush1.msra.mxu0 %v110
  %208 = vmatprep.subr.mxu0 %v113
  %209 = vmatpush1.msra.mxu0 %v112
  %210 = vmatprep.subr.mxu0 %v115
  %211 = vmatpush1.msra.mxu0 %v114
  %212 = vmatprep.subr.mxu0 %v117
  %213 = vmatpush1.msra.mxu0 %v116
  %214 = vmatprep.subr.mxu0 %v119
  %215 = vmatpush1.msra.mxu0 %v118
  %216 = vmatprep.subr.mxu0 %v121
  %217 = vmatpush1.msra.mxu0 %v120
  %218 = vmatprep.subr.mxu0 %v123
  %219 = vmatpush1.msra.mxu0 %v122
  %220 = vmatprep.subr.mxu0 %v125
  %221 = vmatpush1.msra.mxu0 %v124
  %222 = vmatprep.mubr.f32.mxu0 %v15
  %223 = vmatmul.mubr.f32.gmra.mrb[0].mxu0 %v14
  %v224 = vpop.f32.mrb[0].mxu0
  %v225 = vadd.f32 0.0, %v224
  %v226 = vpop.f32.mrb[0].mxu0
  %v227 = vadd.f32 0.0, %v226
  %228 = vmatprep.mubr.f32.mxu0 %v18
  %229 = vmatmul.mubr.f32.gmra.mrb[0].mxu0 %v17
  %v230 = vpop.f32.mrb[0].mxu0
  %v231 = vadd.f32 0.0, %v230
  %v232 = vpop.f32.mrb[0].mxu0
  %v233 = vadd.f32 0.0, %v232
  %234 = vmatprep.mubr.f32.mxu0 %v21
  %235 = vmatmul.mubr.f32.gmra.mrb[0].mxu0 %v20
  %v236 = vpop.f32.mrb[0].mxu0
  %v237 = vadd.f32 0.0, %v236
  %v238 = vpop.f32.mrb[0].mxu0
  %v239 = vadd.f32 0.0, %v238
  %240 = vmatprep.mubr.f32.mxu0 %v24
  %241 = vmatmul.mubr.f32.gmra.mrb[0].mxu0 %v23
  %v242 = vpop.f32.mrb[0].mxu0
  %v243 = vadd.f32 0.0, %v242
  %v244 = vpop.f32.mrb[0].mxu0
  %v245 = vadd.f32 0.0, %v244
  %246 = vmatprep.mubr.f32.mxu0 %v27
  %247 = vmatmul.mubr.f32.gmra.mrb[0].mxu0 %v26
  %v248 = vpop.f32.mrb[0].mxu0
  %v249 = vadd.f32 0.0, %v248
  %v250 = vpop.f32.mrb[0].mxu0
  %v251 = vadd.f32 0.0, %v250
  %252 = vmatprep.mubr.f32.mxu0 %v30
  %253 = vmatmul.mubr.f32.gmra.mrb[0].mxu0 %v29
  %v254 = vpop.f32.mrb[0].mxu0
  %v255 = vadd.f32 0.0, %v254
  %v256 = vpop.f32.mrb[0].mxu0
  %v257 = vadd.f32 0.0, %v256
  %258 = vmatprep.mubr.f32.mxu0 %v33
  %259 = vmatmul.mubr.f32.gmra.mrb[0].mxu0 %v32
  %v260 = vpop.f32.mrb[0].mxu0
  %v261 = vadd.f32 0.0, %v260
  %v262 = vpop.f32.mrb[0].mxu0
  %v263 = vadd.f32 0.0, %v262
  %264 = vmatprep.mubr.f32.mxu0 %v36
  %265 = vmatmul.mubr.f32.gmra.mrb[0].mxu0 %v35
  %v266 = vpop.f32.mrb[0].mxu0
  %v267 = vadd.f32 0.0, %v266
  %v268 = vpop.f32.mrb[0].mxu0
  %v269 = vadd.f32 0.0, %v268
  %270 = vmatprep.mubr.f32.mxu0 %v39
  %271 = vmatmul.mubr.f32.gmra.mrb[0].mxu0 %v38
  %v272 = vpop.f32.mrb[0].mxu0
  %v273 = vadd.f32 0.0, %v272
  %v274 = vpop.f32.mrb[0].mxu0
  %v275 = vadd.f32 0.0, %v274
  %276 = vmatprep.mubr.f32.mxu0 %v42
  %277 = vmatmul.mubr.f32.gmra.mrb[0].mxu0 %v41
  %v278 = vpop.f32.mrb[0].mxu0
  %v279 = vadd.f32 0.0, %v278
  %v280 = vpop.f32.mrb[0].mxu0
  %v281 = vadd.f32 0.0, %v280
  %282 = vmatprep.mubr.f32.mxu0 %v45
  %283 = vmatmul.mubr.f32.gmra.mrb[0].mxu0 %v44
  %v284 = vpop.f32.mrb[0].mxu0
  %v285 = vadd.f32 0.0, %v284
  %v286 = vpop.f32.mrb[0].mxu0
  %v287 = vadd.f32 0.0, %v286
  %288 = vmatprep.mubr.f32.mxu0 %v48
  %289 = vmatmul.mubr.f32.gmra.mrb[0].mxu0 %v47
  %v290 = vpop.f32.mrb[0].mxu0
  %v291 = vadd.f32 0.0, %v290
  %v292 = vpop.f32.mrb[0].mxu0
  %v293 = vadd.f32 0.0, %v292
  %294 = vmatprep.mubr.f32.mxu0 %v51
  %295 = vmatmul.mubr.f32.gmra.mrb[0].mxu0 %v50
  %v296 = vpop.f32.mrb[0].mxu0
  %v297 = vadd.f32 0.0, %v296
  %v298 = vpop.f32.mrb[0].mxu0
  %v299 = vadd.f32 0.0, %v298
  %300 = vmatprep.mubr.f32.mxu0 %v54
  %301 = vmatmul.mubr.f32.gmra.mrb[0].mxu0 %v53
  %v302 = vpop.f32.mrb[0].mxu0
  %v303 = vadd.f32 0.0, %v302
  %v304 = vpop.f32.mrb[0].mxu0
  %v305 = vadd.f32 0.0, %v304
  %306 = vmatprep.mubr.f32.mxu0 %v57
  %307 = vmatmul.mubr.f32.gmra.mrb[0].mxu0 %v56
  %v308 = vpop.f32.mrb[0].mxu0
  %v309 = vadd.f32 0.0, %v308
  %v310 = vpop.f32.mrb[0].mxu0
  %v311 = vadd.f32 0.0, %v310
  %312 = vmatprep.mubr.f32.mxu0 %v60
  %313 = vmatmul.mubr.f32.gmra.mrb[0].mxu0 %v59
  %v314 = vpop.f32.mrb[0].mxu0
  %v315 = vadd.f32 0.0, %v314
  %v316 = vpop.f32.mrb[0].mxu0
  %v317 = vadd.f32 0.0, %v316
  %318 = vdwg.mxu0
  %319 = vmatprep.subr.mxu0 %v127
  %320 = vmatpush1.msra.mxu0 %v126
  %321 = vmatprep.subr.mxu0 %v129
  %322 = vmatpush1.msra.mxu0 %v128
  %323 = vmatprep.subr.mxu0 %v131
  %324 = vmatpush1.msra.mxu0 %v130
  %325 = vmatprep.subr.mxu0 %v133
  %326 = vmatpush1.msra.mxu0 %v132
  %327 = vmatprep.subr.mxu0 %v135
  %328 = vmatpush1.msra.mxu0 %v134
  %329 = vmatprep.subr.mxu0 %v137
  %330 = vmatpush1.msra.mxu0 %v136
  %331 = vmatprep.subr.mxu0 %v139
  %332 = vmatpush1.msra.mxu0 %v138
  %333 = vmatprep.subr.mxu0 %v141
  %334 = vmatpush1.msra.mxu0 %v140
  %335 = vmatprep.subr.mxu0 %v143
  %336 = vmatpush1.msra.mxu0 %v142
  %337 = vmatprep.subr.mxu0 %v145
  %338 = vmatpush1.msra.mxu0 %v144
  %339 = vmatprep.subr.mxu0 %v147
  %340 = vmatpush1.msra.mxu0 %v146
  %341 = vmatprep.subr.mxu0 %v149
  %342 = vmatpush1.msra.mxu0 %v148
  %343 = vmatprep.subr.mxu0 %v151
  %344 = vmatpush1.msra.mxu0 %v150
  %345 = vmatprep.subr.mxu0 %v153
  %346 = vmatpush1.msra.mxu0 %v152
  %347 = vmatprep.subr.mxu0 %v155
  %348 = vmatpush1.msra.mxu0 %v154
  %349 = vmatprep.subr.mxu0 %v157
  %350 = vmatpush1.msra.mxu0 %v156
  %351 = vmatprep.subr.mxu0 0.0
  %352 = vmatpush1.msra.mxu0 0.0
  %353 = vmatprep.subr.mxu0 0.0
  %354 = vmatpush1.msra.mxu0 0.0
  %355 = vmatprep.subr.mxu0 0.0
  %356 = vmatpush1.msra.mxu0 0.0
  %357 = vmatprep.subr.mxu0 0.0
  %358 = vmatpush1.msra.mxu0 0.0
  %359 = vmatprep.subr.mxu0 0.0
  %360 = vmatpush1.msra.mxu0 0.0
  %361 = vmatprep.subr.mxu0 0.0
  %362 = vmatpush1.msra.mxu0 0.0
  %363 = vmatprep.subr.mxu0 0.0
  %364 = vmatpush1.msra.mxu0 0.0
  %365 = vmatprep.subr.mxu0 0.0
  %366 = vmatpush1.msra.mxu0 0.0
  %367 = vmatprep.subr.mxu0 0.0
  %368 = vmatpush1.msra.mxu0 0.0
  %369 = vmatprep.subr.mxu0 0.0
  %370 = vmatpush1.msra.mxu0 0.0
  %371 = vmatprep.subr.mxu0 0.0
  %372 = vmatpush1.msra.mxu0 0.0
  %373 = vmatprep.subr.mxu0 0.0
  %374 = vmatpush1.msra.mxu0 0.0
  %375 = vmatprep.subr.mxu0 0.0
  %376 = vmatpush1.msra.mxu0 0.0
  %377 = vmatprep.subr.mxu0 0.0
  %378 = vmatpush1.msra.mxu0 0.0
  %379 = vmatprep.subr.mxu0 0.0
  %380 = vmatpush1.msra.mxu0 0.0
  %381 = vmatprep.subr.mxu0 0.0
  %382 = vmatpush1.msra.mxu0 0.0
  %383 = vmatprep.mubr.f32.mxu0 0.0
  %384 = vmatmul.mubr.f32.gmra.mrb[0].mxu0 %v16
  %v385 = vpop.f32.mrb[0].mxu0
  %v386 = vadd.f32 %v225, %v385
  %v387 = vpop.f32.mrb[0].mxu0
  %v388 = vadd.f32 %v227, %v387
  %389 = vmatprep.mubr.f32.mxu0 0.0
  %390 = vmatmul.mubr.f32.gmra.mrb[0].mxu0 %v19
  %v391 = vpop.f32.mrb[0].mxu0
  %v392 = vadd.f32 %v231, %v391
  %v393 = vpop.f32.mrb[0].mxu0
  %v394 = vadd.f32 %v233, %v393
  %395 = vmatprep.mubr.f32.mxu0 0.0
  %396 = vmatmul.mubr.f32.gmra.mrb[0].mxu0 %v22
  %v397 = vpop.f32.mrb[0].mxu0
  %v398 = vadd.f32 %v237, %v397
  %v399 = vpop.f32.mrb[0].mxu0
  %v400 = vadd.f32 %v239, %v399
  %401 = vmatprep.mubr.f32.mxu0 0.0
  %402 = vmatmul.mubr.f32.gmra.mrb[0].mxu0 %v25
  %v403 = vpop.f32.mrb[0].mxu0
  %v404 = vadd.f32 %v243, %v403
  %v405 = vpop.f32.mrb[0].mxu0
  %v406 = vadd.f32 %v245, %v405
  %407 = vmatprep.mubr.f32.mxu0 0.0
  %408 = vmatmul.mubr.f32.gmra.mrb[0].mxu0 %v28
  %v409 = vpop.f32.mrb[0].mxu0
  %v410 = vadd.f32 %v249, %v409
  %v411 = vpop.f32.mrb[0].mxu0
  %v412 = vadd.f32 %v251, %v411
  %413 = vmatprep.mubr.f32.mxu0 0.0
  %414 = vmatmul.mubr.f32.gmra.mrb[0].mxu0 %v31
  %v415 = vpop.f32.mrb[0].mxu0
  %v416 = vadd.f32 %v255, %v415
  %v417 = vpop.f32.mrb[0].mxu0
  %v418 = vadd.f32 %v257, %v417
  %419 = vmatprep.mubr.f32.mxu0 0.0
  %420 = vmatmul.mubr.f32.gmra.mrb[0].mxu0 %v34
  %v421 = vpop.f32.mrb[0].mxu0
  %v422 = vadd.f32 %v261, %v421
  %v423 = vpop.f32.mrb[0].mxu0
  %v424 = vadd.f32 %v263, %v423
  %425 = vmatprep.mubr.f32.mxu0 0.0
  %426 = vmatmul.mubr.f32.gmra.mrb[0].mxu0 %v37
  %v427 = vpop.f32.mrb[0].mxu0
  %v428 = vadd.f32 %v267, %v427
  %v429 = vpop.f32.mrb[0].mxu0
  %v430 = vadd.f32 %v269, %v429
  %431 = vmatprep.mubr.f32.mxu0 0.0
  %432 = vmatmul.mubr.f32.gmra.mrb[0].mxu0 %v40
  %v433 = vpop.f32.mrb[0].mxu0
  %v434 = vadd.f32 %v273, %v433
  %v435 = vpop.f32.mrb[0].mxu0
  %v436 = vadd.f32 %v275, %v435
  %437 = vmatprep.mubr.f32.mxu0 0.0
  %438 = vmatmul.mubr.f32.gmra.mrb[0].mxu0 %v43
  %v439 = vpop.f32.mrb[0].mxu0
  %v440 = vadd.f32 %v279, %v439
  %v441 = vpop.f32.mrb[0].mxu0
  %v442 = vadd.f32 %v281, %v441
  %443 = vmatprep.mubr.f32.mxu0 0.0
  %444 = vmatmul.mubr.f32.gmra.mrb[0].mxu0 %v46
  %v445 = vpop.f32.mrb[0].mxu0
  %v446 = vadd.f32 %v285, %v445
  %v447 = vpop.f32.mrb[0].mxu0
  %v448 = vadd.f32 %v287, %v447
  %449 = vmatprep.mubr.f32.mxu0 0.0
  %450 = vmatmul.mubr.f32.gmra.mrb[0].mxu0 %v49
  %v451 = vpop.f32.mrb[0].mxu0
  %v452 = vadd.f32 %v291, %v451
  %v453 = vpop.f32.mrb[0].mxu0
  %v454 = vadd.f32 %v293, %v453
  %455 = vmatprep.mubr.f32.mxu0 0.0
  %456 = vmatmul.mubr.f32.gmra.mrb[0].mxu0 %v52
  %v457 = vpop.f32.mrb[0].mxu0
  %v458 = vadd.f32 %v297, %v457
  %v459 = vpop.f32.mrb[0].mxu0
  %v460 = vadd.f32 %v299, %v459
  %461 = vmatprep.mubr.f32.mxu0 0.0
  %462 = vmatmul.mubr.f32.gmra.mrb[0].mxu0 %v55
  %v463 = vpop.f32.mrb[0].mxu0
  %v464 = vadd.f32 %v303, %v463
  %v465 = vpop.f32.mrb[0].mxu0
  %v466 = vadd.f32 %v305, %v465
  %467 = vmatprep.mubr.f32.mxu0 0.0
  %468 = vmatmul.mubr.f32.gmra.mrb[0].mxu0 %v58
  %v469 = vpop.f32.mrb[0].mxu0
  %v470 = vadd.f32 %v309, %v469
  %v471 = vpop.f32.mrb[0].mxu0
  %v472 = vadd.f32 %v311, %v471
  %473 = vmatprep.mubr.f32.mxu0 0.0
  %474 = vmatmul.mubr.f32.gmra.mrb[0].mxu0 %v61
  %v475 = vpop.f32.mrb[0].mxu0
  %v476 = vadd.f32 %v315, %v475
  %v477 = vpop.f32.mrb[0].mxu0
  %v478 = vadd.f32 %v317, %v477
  %479 = vdwg.mxu0
  %v480 = vlaneseq
  %v481 = vand.u32 %v480, 127
  %v482 = vadd.s32 %v481, 128
  %vm483 = vcmp.lt.s32.totalorder %v481, 196
  %vm484 = vcmp.lt.s32.totalorder %v482, 196
  %v485 = vsel %vm483, %v386, 0.0
  %v486 = vsel %vm484, %v388, 0.0
  %v487 = vsel %vm483, %v392, 0.0
  %v488 = vsel %vm484, %v394, 0.0
  %v489 = vsel %vm483, %v398, 0.0
  %v490 = vsel %vm484, %v400, 0.0
  %v491 = vsel %vm483, %v404, 0.0
  %v492 = vsel %vm484, %v406, 0.0
  %v493 = vsel %vm483, %v410, 0.0
  %v494 = vsel %vm484, %v412, 0.0
  %v495 = vsel %vm483, %v416, 0.0
  %v496 = vsel %vm484, %v418, 0.0
  %v497 = vsel %vm483, %v422, 0.0
  %v498 = vsel %vm484, %v424, 0.0
  %v499 = vsel %vm483, %v428, 0.0
  %v500 = vsel %vm484, %v430, 0.0
  %v501 = vsel %vm483, %v434, 0.0
  %v502 = vsel %vm484, %v436, 0.0
  %v503 = vsel %vm483, %v440, 0.0
  %v504 = vsel %vm484, %v442, 0.0
  %v505 = vsel %vm483, %v446, 0.0
  %v506 = vsel %vm484, %v448, 0.0
  %v507 = vsel %vm483, %v452, 0.0
  %v508 = vsel %vm484, %v454, 0.0
  %v509 = vsel %vm483, %v458, 0.0
  %v510 = vsel %vm484, %v460, 0.0
  %v511 = vsel %vm483, %v464, 0.0
  %v512 = vsel %vm484, %v466, 0.0
  %v513 = vsel %vm483, %v470, 0.0
  %v514 = vsel %vm484, %v472, 0.0
  %v515 = vsel %vm483, %v476, 0.0
  %v516 = vsel %vm484, %v478, 0.0
  %vm517 = vcmask 556032
  %v518 = vsel %vm517, %v486, 0.0
  %v519 = vadd.f32 %v485, %v518
  %520 = vadd.xlane.f32.xlu0 %v519
  %v521 = vpop.xlane.xlu0 %520
  %v522 = vsel %vm517, %v488, 0.0
  %v523 = vadd.f32 %v487, %v522
  %524 = vadd.xlane.f32.xlu0 %v523
  %v525 = vpop.xlane.xlu0 %524
  %v526 = vsel %vm517, %v490, 0.0
  %v527 = vadd.f32 %v489, %v526
  %528 = vadd.xlane.f32.xlu0 %v527
  %v529 = vpop.xlane.xlu0 %528
  %v530 = vsel %vm517, %v492, 0.0
  %v531 = vadd.f32 %v491, %v530
  %532 = vadd.xlane.f32.xlu0 %v531
  %v533 = vpop.xlane.xlu0 %532
  %v534 = vsel %vm517, %v494, 0.0
  %v535 = vadd.f32 %v493, %v534
  %536 = vadd.xlane.f32.xlu0 %v535
  %v537 = vpop.xlane.xlu0 %536
  %v538 = vsel %vm517, %v496, 0.0
  %v539 = vadd.f32 %v495, %v538
  %540 = vadd.xlane.f32.xlu0 %v539
  %v541 = vpop.xlane.xlu0 %540
  %v542 = vsel %vm517, %v498, 0.0
  %v543 = vadd.f32 %v497, %v542
  %544 = vadd.xlane.f32.xlu0 %v543
  %v545 = vpop.xlane.xlu0 %544
  %v546 = vsel %vm517, %v500, 0.0
  %v547 = vadd.f32 %v499, %v546
  %548 = vadd.xlane.f32.xlu0 %v547
  %v549 = vpop.xlane.xlu0 %548
  %v550 = vsel %vm517, %v502, 0.0
  %v551 = vadd.f32 %v501, %v550
  %552 = vadd.xlane.f32.xlu0 %v551
  %v553 = vpop.xlane.xlu0 %552
  %v554 = vsel %vm517, %v504, 0.0
  %v555 = vadd.f32 %v503, %v554
  %556 = vadd.xlane.f32.xlu0 %v555
  %v557 = vpop.xlane.xlu0 %556
  %v558 = vsel %vm517, %v506, 0.0
  %v559 = vadd.f32 %v505, %v558
  %560 = vadd.xlane.f32.xlu0 %v559
  %v561 = vpop.xlane.xlu0 %560
  %v562 = vsel %vm517, %v508, 0.0
  %v563 = vadd.f32 %v507, %v562
  %564 = vadd.xlane.f32.xlu0 %v563
  %v565 = vpop.xlane.xlu0 %564
  %v566 = vsel %vm517, %v510, 0.0
  %v567 = vadd.f32 %v509, %v566
  %568 = vadd.xlane.f32.xlu0 %v567
  %v569 = vpop.xlane.xlu0 %568
  %v570 = vsel %vm517, %v512, 0.0
  %v571 = vadd.f32 %v511, %v570
  %572 = vadd.xlane.f32.xlu0 %v571
  %v573 = vpop.xlane.xlu0 %572
  %v574 = vsel %vm517, %v514, 0.0
  %v575 = vadd.f32 %v513, %v574
  %576 = vadd.xlane.f32.xlu0 %v575
  %v577 = vpop.xlane.xlu0 %576
  %v578 = vsel %vm517, %v516, 0.0
  %v579 = vadd.f32 %v515, %v578
  %580 = vadd.xlane.f32.xlu0 %v579
  %v581 = vpop.xlane.xlu0 %580
  %v582 = vrcp.pop 196.0
  %v583 = vmul.f32 %v521, %v582
  %v584 = vmul.f32 %v525, %v582
  %v585 = vmul.f32 %v529, %v582
  %v586 = vmul.f32 %v533, %v582
  %v587 = vmul.f32 %v537, %v582
  %v588 = vmul.f32 %v541, %v582
  %v589 = vmul.f32 %v545, %v582
  %v590 = vmul.f32 %v549, %v582
  %v591 = vmul.f32 %v553, %v582
  %v592 = vmul.f32 %v557, %v582
  %v593 = vmul.f32 %v561, %v582
  %v594 = vmul.f32 %v565, %v582
  %v595 = vmul.f32 %v569, %v582
  %v596 = vmul.f32 %v573, %v582
  %v597 = vmul.f32 %v577, %v582
  %v598 = vmul.f32 %v581, %v582
  %v599 = vsub.f32 %v386, %v583
  %v600 = vsub.f32 %v388, %v583
  %v601 = vsub.f32 %v392, %v584
  %v602 = vsub.f32 %v394, %v584
  %v603 = vsub.f32 %v398, %v585
  %v604 = vsub.f32 %v400, %v585
  %v605 = vsub.f32 %v404, %v586
  %v606 = vsub.f32 %v406, %v586
  %v607 = vsub.f32 %v410, %v587
  %v608 = vsub.f32 %v412, %v587
  %v609 = vsub.f32 %v416, %v588
  %v610 = vsub.f32 %v418, %v588
  %v611 = vsub.f32 %v422, %v589
  %v612 = vsub.f32 %v424, %v589
  %v613 = vsub.f32 %v428, %v590
  %v614 = vsub.f32 %v430, %v590
  %v615 = vsub.f32 %v434, %v591
  %v616 = vsub.f32 %v436, %v591
  %v617 = vsub.f32 %v440, %v592
  %v618 = vsub.f32 %v442, %v592
  %v619 = vsub.f32 %v446, %v593
  %v620 = vsub.f32 %v448, %v593
  %v621 = vsub.f32 %v452, %v594
  %v622 = vsub.f32 %v454, %v594
  %v623 = vsub.f32 %v458, %v595
  %v624 = vsub.f32 %v460, %v595
  %v625 = vsub.f32 %v464, %v596
  %v626 = vsub.f32 %v466, %v596
  %v627 = vsub.f32 %v470, %v597
  %v628 = vsub.f32 %v472, %v597
  %v629 = vsub.f32 %v476, %v598
  %v630 = vsub.f32 %v478, %v598
  %v631 = vsel %vm483, %v599, 0.0
  %v632 = vsel %vm484, %v600, 0.0
  %v633 = vsel %vm483, %v601, 0.0
  %v634 = vsel %vm484, %v602, 0.0
  %v635 = vsel %vm483, %v603, 0.0
  %v636 = vsel %vm484, %v604, 0.0
  %v637 = vsel %vm483, %v605, 0.0
  %v638 = vsel %vm484, %v606, 0.0
  %v639 = vsel %vm483, %v607, 0.0
  %v640 = vsel %vm484, %v608, 0.0
  %v641 = vsel %vm483, %v609, 0.0
  %v642 = vsel %vm484, %v610, 0.0
  %v643 = vsel %vm483, %v611, 0.0
  %v644 = vsel %vm484, %v612, 0.0
  %v645 = vsel %vm483, %v613, 0.0
  %v646 = vsel %vm484, %v614, 0.0
  %v647 = vsel %vm483, %v615, 0.0
  %v648 = vsel %vm484, %v616, 0.0
  %v649 = vsel %vm483, %v617, 0.0
  %v650 = vsel %vm484, %v618, 0.0
  %v651 = vsel %vm483, %v619, 0.0
  %v652 = vsel %vm484, %v620, 0.0
  %v653 = vsel %vm483, %v621, 0.0
  %v654 = vsel %vm484, %v622, 0.0
  %v655 = vsel %vm483, %v623, 0.0
  %v656 = vsel %vm484, %v624, 0.0
  %v657 = vsel %vm483, %v625, 0.0
  %v658 = vsel %vm484, %v626, 0.0
  %v659 = vsel %vm483, %v627, 0.0
  %v660 = vsel %vm484, %v628, 0.0
  %v661 = vsel %vm483, %v629, 0.0
  %v662 = vsel %vm484, %v630, 0.0
  %v663 = vmul.f32 %v631, %v631
  %v664 = vmul.f32 %v632, %v632
  %v665 = vmul.f32 %v633, %v633
  %v666 = vmul.f32 %v634, %v634
  %v667 = vmul.f32 %v635, %v635
  %v668 = vmul.f32 %v636, %v636
  %v669 = vmul.f32 %v637, %v637
  %v670 = vmul.f32 %v638, %v638
  %v671 = vmul.f32 %v639, %v639
  %v672 = vmul.f32 %v640, %v640
  %v673 = vmul.f32 %v641, %v641
  %v674 = vmul.f32 %v642, %v642
  %v675 = vmul.f32 %v643, %v643
  %v676 = vmul.f32 %v644, %v644
  %v677 = vmul.f32 %v645, %v645
  %v678 = vmul.f32 %v646, %v646
  %v679 = vmul.f32 %v647, %v647
  %v680 = vmul.f32 %v648, %v648
  %v681 = vmul.f32 %v649, %v649
  %v682 = vmul.f32 %v650, %v650
  %v683 = vmul.f32 %v651, %v651
  %v684 = vmul.f32 %v652, %v652
  %v685 = vmul.f32 %v653, %v653
  %v686 = vmul.f32 %v654, %v654
  %v687 = vmul.f32 %v655, %v655
  %v688 = vmul.f32 %v656, %v656
  %v689 = vmul.f32 %v657, %v657
  %v690 = vmul.f32 %v658, %v658
  %v691 = vmul.f32 %v659, %v659
  %v692 = vmul.f32 %v660, %v660
  %v693 = vmul.f32 %v661, %v661
  %v694 = vmul.f32 %v662, %v662
  %v695 = vsel %vm517, %v664, 0.0
  %v696 = vadd.f32 %v663, %v695
  %697 = vadd.xlane.f32.xlu0 %v696
  %v698 = vpop.xlane.xlu0 %697
  %v699 = vsel %vm517, %v666, 0.0
  %v700 = vadd.f32 %v665, %v699
  %701 = vadd.xlane.f32.xlu0 %v700
  %v702 = vpop.xlane.xlu0 %701
  %v703 = vsel %vm517, %v668, 0.0
  %v704 = vadd.f32 %v667, %v703
  %705 = vadd.xlane.f32.xlu0 %v704
  %v706 = vpop.xlane.xlu0 %705
  %v707 = vsel %vm517, %v670, 0.0
  %v708 = vadd.f32 %v669, %v707
  %709 = vadd.xlane.f32.xlu0 %v708
  %v710 = vpop.xlane.xlu0 %709
  %v711 = vsel %vm517, %v672, 0.0
  %v712 = vadd.f32 %v671, %v711
  %713 = vadd.xlane.f32.xlu0 %v712
  %v714 = vpop.xlane.xlu0 %713
  %v715 = vsel %vm517, %v674, 0.0
  %v716 = vadd.f32 %v673, %v715
  %717 = vadd.xlane.f32.xlu0 %v716
  %v718 = vpop.xlane.xlu0 %717
  %v719 = vsel %vm517, %v676, 0.0
  %v720 = vadd.f32 %v675, %v719
  %721 = vadd.xlane.f32.xlu0 %v720
  %v722 = vpop.xlane.xlu0 %721
  %v723 = vsel %vm517, %v678, 0.0
  %v724 = vadd.f32 %v677, %v723
  %725 = vadd.xlane.f32.xlu0 %v724
  %v726 = vpop.xlane.xlu0 %725
  %v727 = vsel %vm517, %v680, 0.0
  %v728 = vadd.f32 %v679, %v727
  %729 = vadd.xlane.f32.xlu0 %v728
  %v730 = vpop.xlane.xlu0 %729
  %v731 = vsel %vm517, %v682, 0.0
  %v732 = vadd.f32 %v681, %v731
  %733 = vadd.xlane.f32.xlu0 %v732
  %v734 = vpop.xlane.xlu0 %733
  %v735 = vsel %vm517, %v684, 0.0
  %v736 = vadd.f32 %v683, %v735
  %737 = vadd.xlane.f32.xlu0 %v736
  %v738 = vpop.xlane.xlu0 %737
  %v739 = vsel %vm517, %v686, 0.0
  %v740 = vadd.f32 %v685, %v739
  %741 = vadd.xlane.f32.xlu0 %v740
  %v742 = vpop.xlane.xlu0 %741
  %v743 = vsel %vm517, %v688, 0.0
  %v744 = vadd.f32 %v687, %v743
  %745 = vadd.xlane.f32.xlu0 %v744
  %v746 = vpop.xlane.xlu0 %745
  %v747 = vsel %vm517, %v690, 0.0
  %v748 = vadd.f32 %v689, %v747
  %749 = vadd.xlane.f32.xlu0 %v748
  %v750 = vpop.xlane.xlu0 %749
  %v751 = vsel %vm517, %v692, 0.0
  %v752 = vadd.f32 %v691, %v751
  %753 = vadd.xlane.f32.xlu0 %v752
  %v754 = vpop.xlane.xlu0 %753
  %v755 = vsel %vm517, %v694, 0.0
  %v756 = vadd.f32 %v693, %v755
  %757 = vadd.xlane.f32.xlu0 %v756
  %v758 = vpop.xlane.xlu0 %757
  %v759 = vmul.f32 %v698, %v582
  %v760 = vmul.f32 %v702, %v582
  %v761 = vmul.f32 %v706, %v582
  %v762 = vmul.f32 %v710, %v582
  %v763 = vmul.f32 %v714, %v582
  %v764 = vmul.f32 %v718, %v582
  %v765 = vmul.f32 %v722, %v582
  %v766 = vmul.f32 %v726, %v582
  %v767 = vmul.f32 %v730, %v582
  %v768 = vmul.f32 %v734, %v582
  %v769 = vmul.f32 %v738, %v582
  %v770 = vmul.f32 %v742, %v582
  %v771 = vmul.f32 %v746, %v582
  %v772 = vmul.f32 %v750, %v582
  %v773 = vmul.f32 %v754, %v582
  %v774 = vmul.f32 %v758, %v582
  %v775 = vadd.f32 %v759, 1e-05
  %v776 = vadd.f32 %v760, 1e-05
  %v777 = vadd.f32 %v761, 1e-05
  %v778 = vadd.f32 %v762, 1e-05
  %v779 = vadd.f32 %v763, 1e-05
  %v780 = vadd.f32 %v764, 1e-05
  %v781 = vadd.f32 %v765, 1e-05
  %v782 = vadd.f32 %v766, 1e-05
  %v783 = vadd.f32 %v767, 1e-05
  %v784 = vadd.f32 %v768, 1e-05
  %v785 = vadd.f32 %v769, 1e-05
  %v786 = vadd.f32 %v770, 1e-05
  %v787 = vadd.f32 %v771, 1e-05
  %v788 = vadd.f32 %v772, 1e-05
  %v789 = vadd.f32 %v773, 1e-05
  %v790 = vadd.f32 %v774, 1e-05
  %v791 = vrsqrt.pop %v775
  %v792 = vrsqrt.pop %v776
  %v793 = vrsqrt.pop %v777
  %v794 = vrsqrt.pop %v778
  %v795 = vrsqrt.pop %v779
  %v796 = vrsqrt.pop %v780
  %v797 = vrsqrt.pop %v781
  %v798 = vrsqrt.pop %v782
  %v799 = vrsqrt.pop %v783
  %v800 = vrsqrt.pop %v784
  %v801 = vrsqrt.pop %v785
  %v802 = vrsqrt.pop %v786
  %v803 = vrsqrt.pop %v787
  %v804 = vrsqrt.pop %v788
  %v805 = vrsqrt.pop %v789
  %v806 = vrsqrt.pop %v790
  %v807 = vld [vmem:[%s2] sm:$0xff]
  %v808 = vld [vmem:[%s2 + $0x8] sm:$0xff]
  %v809 = vld [vmem:[%s2 + $0x10] sm:$0xff]
  %v810 = vld [vmem:[%s2 + $0x18] sm:$0xff]
  %v811 = vld [vmem:[%s2 + $0x20] sm:$0xff]
  %v812 = vld [vmem:[%s2 + $0x28] sm:$0xff]
  %v813 = vld [vmem:[%s2 + $0x30] sm:$0xff]
  %v814 = vld [vmem:[%s2 + $0x38] sm:$0xff]
  %v815 = vld [vmem:[%s2 + $0x40] sm:$0xff]
  %v816 = vld [vmem:[%s2 + $0x48] sm:$0xff]
  %v817 = vld [vmem:[%s2 + $0x50] sm:$0xff]
  %v818 = vld [vmem:[%s2 + $0x58] sm:$0xff]
  %v819 = vld [vmem:[%s2 + $0x60] sm:$0xff]
  %v820 = vld [vmem:[%s2 + $0x68] sm:$0xff]
  %v821 = vld [vmem:[%s2 + $0x70] sm:$0xff]
  %v822 = vld [vmem:[%s2 + $0x78] sm:$0xff]
  %v823 = vmul.f32 %v791, %v807
  %v824 = vmul.f32 %v792, %v808
  %v825 = vmul.f32 %v793, %v809
  %v826 = vmul.f32 %v794, %v810
  %v827 = vmul.f32 %v795, %v811
  %v828 = vmul.f32 %v796, %v812
  %v829 = vmul.f32 %v797, %v813
  %v830 = vmul.f32 %v798, %v814
  %v831 = vmul.f32 %v799, %v815
  %v832 = vmul.f32 %v800, %v816
  %v833 = vmul.f32 %v801, %v817
  %v834 = vmul.f32 %v802, %v818
  %v835 = vmul.f32 %v803, %v819
  %v836 = vmul.f32 %v804, %v820
  %v837 = vmul.f32 %v805, %v821
  %v838 = vmul.f32 %v806, %v822
  %v839 = vmul.f32 %v583, %v823
  %v840 = vmul.f32 %v584, %v824
  %v841 = vmul.f32 %v585, %v825
  %v842 = vmul.f32 %v586, %v826
  %v843 = vmul.f32 %v587, %v827
  %v844 = vmul.f32 %v588, %v828
  %v845 = vmul.f32 %v589, %v829
  %v846 = vmul.f32 %v590, %v830
  %v847 = vmul.f32 %v591, %v831
  %v848 = vmul.f32 %v592, %v832
  %v849 = vmul.f32 %v593, %v833
  %v850 = vmul.f32 %v594, %v834
  %v851 = vmul.f32 %v595, %v835
  %v852 = vmul.f32 %v596, %v836
  %v853 = vmul.f32 %v597, %v837
  %v854 = vmul.f32 %v598, %v838
  %871 = vrot.lane.b32.xlu0 %v839, 1
  %v872 = vpop.permute.xlu0 %871
  %873 = vrot.lane.b32.xlu0 %v840, 1
  %v874 = vpop.permute.xlu0 %873
  %875 = vrot.lane.b32.xlu0 %v841, 1
  %v876 = vpop.permute.xlu0 %875
  %877 = vrot.lane.b32.xlu0 %v842, 1
  %v878 = vpop.permute.xlu0 %877
  %879 = vrot.lane.b32.xlu0 %v843, 1
  %v880 = vpop.permute.xlu0 %879
  %881 = vrot.lane.b32.xlu0 %v844, 1
  %v882 = vpop.permute.xlu0 %881
  %883 = vrot.lane.b32.xlu0 %v845, 1
  %v884 = vpop.permute.xlu0 %883
  %885 = vrot.lane.b32.xlu0 %v846, 1
  %v886 = vpop.permute.xlu0 %885
  %887 = vrot.lane.b32.xlu0 %v847, 1
  %v888 = vpop.permute.xlu0 %887
  %889 = vrot.lane.b32.xlu0 %v848, 1
  %v890 = vpop.permute.xlu0 %889
  %891 = vrot.lane.b32.xlu0 %v849, 1
  %v892 = vpop.permute.xlu0 %891
  %893 = vrot.lane.b32.xlu0 %v850, 1
  %v894 = vpop.permute.xlu0 %893
  %895 = vrot.lane.b32.xlu0 %v851, 1
  %v896 = vpop.permute.xlu0 %895
  %897 = vrot.lane.b32.xlu0 %v852, 1
  %v898 = vpop.permute.xlu0 %897
  %899 = vrot.lane.b32.xlu0 %v853, 1
  %v900 = vpop.permute.xlu0 %899
  %901 = vrot.lane.b32.xlu0 %v854, 1
  %v902 = vpop.permute.xlu0 %901
  %v919 = vsub.f32 %v807, %v872
  %v920 = vsub.f32 %v808, %v874
  %v921 = vsub.f32 %v809, %v876
  %v922 = vsub.f32 %v810, %v878
  %v923 = vsub.f32 %v811, %v880
  %v924 = vsub.f32 %v812, %v882
  %v925 = vsub.f32 %v813, %v884
  %v926 = vsub.f32 %v814, %v886
  %v927 = vsub.f32 %v815, %v888
  %v928 = vsub.f32 %v816, %v890
  %v929 = vsub.f32 %v817, %v892
  %v930 = vsub.f32 %v818, %v894
  %v931 = vsub.f32 %v819, %v896
  %v932 = vsub.f32 %v820, %v898
  %v933 = vsub.f32 %v821, %v900
  %v934 = vsub.f32 %v822, %v902
  %936 = vset.pattern.permute.xlu0 0
  %937 = vperm.xlu0 %936, %v823
  %v938 = vpop.permute.xlu0 %937
  %941 = vset.pattern.permute.xlu0 0
  %942 = vperm.xlu0 %941, %v824
  %v943 = vpop.permute.xlu0 %942
  %946 = vset.pattern.permute.xlu0 0
  %947 = vperm.xlu0 %946, %v825
  %v948 = vpop.permute.xlu0 %947
  %951 = vset.pattern.permute.xlu0 0
  %952 = vperm.xlu0 %951, %v826
  %v953 = vpop.permute.xlu0 %952
  %956 = vset.pattern.permute.xlu0 0
  %957 = vperm.xlu0 %956, %v827
  %v958 = vpop.permute.xlu0 %957
  %961 = vset.pattern.permute.xlu0 0
  %962 = vperm.xlu0 %961, %v828
  %v963 = vpop.permute.xlu0 %962
  %966 = vset.pattern.permute.xlu0 0
  %967 = vperm.xlu0 %966, %v829
  %v968 = vpop.permute.xlu0 %967
  %971 = vset.pattern.permute.xlu0 0
  %972 = vperm.xlu0 %971, %v830
  %v973 = vpop.permute.xlu0 %972
  %976 = vset.pattern.permute.xlu0 0
  %977 = vperm.xlu0 %976, %v831
  %v978 = vpop.permute.xlu0 %977
  %981 = vset.pattern.permute.xlu0 0
  %982 = vperm.xlu0 %981, %v832
  %v983 = vpop.permute.xlu0 %982
  %986 = vset.pattern.permute.xlu0 0
  %987 = vperm.xlu0 %986, %v833
  %v988 = vpop.permute.xlu0 %987
  %991 = vset.pattern.permute.xlu0 0
  %992 = vperm.xlu0 %991, %v834
  %v993 = vpop.permute.xlu0 %992
  %996 = vset.pattern.permute.xlu0 0
  %997 = vperm.xlu0 %996, %v835
  %v998 = vpop.permute.xlu0 %997
  %1001 = vset.pattern.permute.xlu0 0
  %1002 = vperm.xlu0 %1001, %v836
  %v1003 = vpop.permute.xlu0 %1002
  %1006 = vset.pattern.permute.xlu0 0
  %1007 = vperm.xlu0 %1006, %v837
  %v1008 = vpop.permute.xlu0 %1007
  %1011 = vset.pattern.permute.xlu0 0
  %1012 = vperm.xlu0 %1011, %v838
  %v1013 = vpop.permute.xlu0 %1012
  %v1015 = vmul.f32 %v386, %v938
  %v1016 = vmul.f32 %v388, %v938
  %v1017 = vmul.f32 %v392, %v943
  %v1018 = vmul.f32 %v394, %v943
  %v1019 = vmul.f32 %v398, %v948
  %v1020 = vmul.f32 %v400, %v948
  %v1021 = vmul.f32 %v404, %v953
  %v1022 = vmul.f32 %v406, %v953
  %v1023 = vmul.f32 %v410, %v958
  %v1024 = vmul.f32 %v412, %v958
  %v1025 = vmul.f32 %v416, %v963
  %v1026 = vmul.f32 %v418, %v963
  %v1027 = vmul.f32 %v422, %v968
  %v1028 = vmul.f32 %v424, %v968
  %v1029 = vmul.f32 %v428, %v973
  %v1030 = vmul.f32 %v430, %v973
  %v1031 = vmul.f32 %v434, %v978
  %v1032 = vmul.f32 %v436, %v978
  %v1033 = vmul.f32 %v440, %v983
  %v1034 = vmul.f32 %v442, %v983
  %v1035 = vmul.f32 %v446, %v988
  %v1036 = vmul.f32 %v448, %v988
  %v1037 = vmul.f32 %v452, %v993
  %v1038 = vmul.f32 %v454, %v993
  %v1039 = vmul.f32 %v458, %v998
  %v1040 = vmul.f32 %v460, %v998
  %v1041 = vmul.f32 %v464, %v1003
  %v1042 = vmul.f32 %v466, %v1003
  %v1043 = vmul.f32 %v470, %v1008
  %v1044 = vmul.f32 %v472, %v1008
  %v1045 = vmul.f32 %v476, %v1013
  %v1046 = vmul.f32 %v478, %v1013
  %1048 = vset.pattern.permute.xlu0 1
  %1049 = vperm.xlu0 %1048, %v919
  %v1050 = vpop.permute.xlu0 %1049
  %1053 = vset.pattern.permute.xlu0 1
  %1054 = vperm.xlu0 %1053, %v920
  %v1055 = vpop.permute.xlu0 %1054
  %1058 = vset.pattern.permute.xlu0 1
  %1059 = vperm.xlu0 %1058, %v921
  %v1060 = vpop.permute.xlu0 %1059
  %1063 = vset.pattern.permute.xlu0 1
  %1064 = vperm.xlu0 %1063, %v922
  %v1065 = vpop.permute.xlu0 %1064
  %1068 = vset.pattern.permute.xlu0 1
  %1069 = vperm.xlu0 %1068, %v923
  %v1070 = vpop.permute.xlu0 %1069
  %1073 = vset.pattern.permute.xlu0 1
  %1074 = vperm.xlu0 %1073, %v924
  %v1075 = vpop.permute.xlu0 %1074
  %1078 = vset.pattern.permute.xlu0 1
  %1079 = vperm.xlu0 %1078, %v925
  %v1080 = vpop.permute.xlu0 %1079
  %1083 = vset.pattern.permute.xlu0 1
  %1084 = vperm.xlu0 %1083, %v926
  %v1085 = vpop.permute.xlu0 %1084
  %1088 = vset.pattern.permute.xlu0 1
  %1089 = vperm.xlu0 %1088, %v927
  %v1090 = vpop.permute.xlu0 %1089
  %1093 = vset.pattern.permute.xlu0 1
  %1094 = vperm.xlu0 %1093, %v928
  %v1095 = vpop.permute.xlu0 %1094
  %1098 = vset.pattern.permute.xlu0 1
  %1099 = vperm.xlu0 %1098, %v929
  %v1100 = vpop.permute.xlu0 %1099
  %1103 = vset.pattern.permute.xlu0 1
  %1104 = vperm.xlu0 %1103, %v930
  %v1105 = vpop.permute.xlu0 %1104
  %1108 = vset.pattern.permute.xlu0 1
  %1109 = vperm.xlu0 %1108, %v931
  %v1110 = vpop.permute.xlu0 %1109
  %1113 = vset.pattern.permute.xlu0 1
  %1114 = vperm.xlu0 %1113, %v932
  %v1115 = vpop.permute.xlu0 %1114
  %1118 = vset.pattern.permute.xlu0 1
  %1119 = vperm.xlu0 %1118, %v933
  %v1120 = vpop.permute.xlu0 %1119
  %1123 = vset.pattern.permute.xlu0 1
  %1124 = vperm.xlu0 %1123, %v934
  %v1125 = vpop.permute.xlu0 %1124
  %v1127 = vadd.f32 %v1015, %v1050
  %v1128 = vadd.f32 %v1016, %v1050
  %v1129 = vadd.f32 %v1017, %v1055
  %v1130 = vadd.f32 %v1018, %v1055
  %v1131 = vadd.f32 %v1019, %v1060
  %v1132 = vadd.f32 %v1020, %v1060
  %v1133 = vadd.f32 %v1021, %v1065
  %v1134 = vadd.f32 %v1022, %v1065
  %v1135 = vadd.f32 %v1023, %v1070
  %v1136 = vadd.f32 %v1024, %v1070
  %v1137 = vadd.f32 %v1025, %v1075
  %v1138 = vadd.f32 %v1026, %v1075
  %v1139 = vadd.f32 %v1027, %v1080
  %v1140 = vadd.f32 %v1028, %v1080
  %v1141 = vadd.f32 %v1029, %v1085
  %v1142 = vadd.f32 %v1030, %v1085
  %v1143 = vadd.f32 %v1031, %v1090
  %v1144 = vadd.f32 %v1032, %v1090
  %v1145 = vadd.f32 %v1033, %v1095
  %v1146 = vadd.f32 %v1034, %v1095
  %v1147 = vadd.f32 %v1035, %v1100
  %v1148 = vadd.f32 %v1036, %v1100
  %v1149 = vadd.f32 %v1037, %v1105
  %v1150 = vadd.f32 %v1038, %v1105
  %v1151 = vadd.f32 %v1039, %v1110
  %v1152 = vadd.f32 %v1040, %v1110
  %v1153 = vadd.f32 %v1041, %v1115
  %v1154 = vadd.f32 %v1042, %v1115
  %v1155 = vadd.f32 %v1043, %v1120
  %v1156 = vadd.f32 %v1044, %v1120
  %v1157 = vadd.f32 %v1045, %v1125
  %v1158 = vadd.f32 %v1046, %v1125
  %1159 = vst [vmem:[%s3] sm:$0xff] %v1127
  %1160 = vst.msk [vmem:[%s3 + $0x8] sm:$0xff] %vm517, %v1128
  %1161 = vst [vmem:[%s3 + $0x10] sm:$0xff] %v1129
  %1162 = vst.msk [vmem:[%s3 + $0x18] sm:$0xff] %vm517, %v1130
  %1163 = vst [vmem:[%s3 + $0x20] sm:$0xff] %v1131
  %1164 = vst.msk [vmem:[%s3 + $0x28] sm:$0xff] %vm517, %v1132
  %1165 = vst [vmem:[%s3 + $0x30] sm:$0xff] %v1133
  %1166 = vst.msk [vmem:[%s3 + $0x38] sm:$0xff] %vm517, %v1134
  %1167 = vst [vmem:[%s3 + $0x40] sm:$0xff] %v1135
  %1168 = vst.msk [vmem:[%s3 + $0x48] sm:$0xff] %vm517, %v1136
  %1169 = vst [vmem:[%s3 + $0x50] sm:$0xff] %v1137
  %1170 = vst.msk [vmem:[%s3 + $0x58] sm:$0xff] %vm517, %v1138
  %1171 = vst [vmem:[%s3 + $0x60] sm:$0xff] %v1139
  %1172 = vst.msk [vmem:[%s3 + $0x68] sm:$0xff] %vm517, %v1140
  %1173 = vst [vmem:[%s3 + $0x70] sm:$0xff] %v1141
  %1174 = vst.msk [vmem:[%s3 + $0x78] sm:$0xff] %vm517, %v1142
  %1175 = vst [vmem:[%s3 + $0x80] sm:$0xff] %v1143
  %1176 = vst.msk [vmem:[%s3 + $0x88] sm:$0xff] %vm517, %v1144
  %1177 = vst [vmem:[%s3 + $0x90] sm:$0xff] %v1145
  %1178 = vst.msk [vmem:[%s3 + $0x98] sm:$0xff] %vm517, %v1146
  %1179 = vst [vmem:[%s3 + $0xa0] sm:$0xff] %v1147
  %1180 = vst.msk [vmem:[%s3 + $0xa8] sm:$0xff] %vm517, %v1148
  %1181 = vst [vmem:[%s3 + $0xb0] sm:$0xff] %v1149
  %1182 = vst.msk [vmem:[%s3 + $0xb8] sm:$0xff] %vm517, %v1150
  %1183 = vst [vmem:[%s3 + $0xc0] sm:$0xff] %v1151
  %1184 = vst.msk [vmem:[%s3 + $0xc8] sm:$0xff] %vm517, %v1152
  %1185 = vst [vmem:[%s3 + $0xd0] sm:$0xff] %v1153
  %1186 = vst.msk [vmem:[%s3 + $0xd8] sm:$0xff] %vm517, %v1154
  %1187 = vst [vmem:[%s3 + $0xe0] sm:$0xff] %v1155
  %1188 = vst.msk [vmem:[%s3 + $0xe8] sm:$0xff] %vm517, %v1156
  %1189 = vst [vmem:[%s3 + $0xf0] sm:$0xff] %v1157
  %1190 = vst.msk [vmem:[%s3 + $0xf8] sm:$0xff] %vm517, %v1158
  // Predicated region
  $region14: #{tpu_custom_call.1} parent=0 // pred_check
    _
  $region15: #{tpu_custom_call.1} parent=0 // pred_check_branch
    %1192 = sbr.rel (0) target = $region17
  $region16: #{tpu_custom_call.1} parent=0 // pred_region
    _
  $region17: #{tpu_custom_call.1} parent=0 // pred_fallthru
    _
  // Predicated region
  $region18: #{tpu_custom_call.1} parent=0 // pred_check
    _
  $region19: #{tpu_custom_call.1} parent=0 // pred_check_branch
    %1194 = sbr.rel (0) target = $region21
  $region20: #{tpu_custom_call.1} parent=0 // pred_region
    _
  $region21: #{tpu_custom_call.1} parent=0 // pred_fallthru
    _

</llo_original>
